<compile_context>
chip_gen: v7x
topology: tpu7x:2x2x1
jax: 0.10.0
libtpu: 0.0.40
codegen_flags: <defaults>
</compile_context>

<pallas_src>
import jax
import jax.numpy as jnp
import numpy as np
from jax import lax
from jax.experimental import pallas as pl
from jax.experimental.pallas import tpu as pltpu


# ----------------------------------------------------------------------------
# Kernels
# ----------------------------------------------------------------------------
def _make_cbam_kernel_matmul(Nb):
    """Fused CBAM kernel; spatial 7x7 conv done as one MXU matmul against a
    precomputed dense (2*HW, HW) conv matrix (boundary masks baked in)."""

    def kernel(x_ref, fc1_wt_ref, fc1_b_ref, fc2_wt_ref, fc2_b_ref,
               convmat_ref, convb_ref, o_ref):
        xb = x_ref[...]                                   # (Nb, C, HW), input dtype
        xf = xb.astype(jnp.float32)

        # ---------------- channel attention (fused avg+max MLP) -------------
        avg_pool = jnp.mean(xf, axis=2)                   # (Nb, C)
        max_pool = jnp.max(xf, axis=2)                    # (Nb, C)
        pooled = jnp.concatenate([avg_pool, max_pool], axis=0)   # (2*Nb, C)

        h = jnp.dot(pooled, fc1_wt_ref[...],
                    preferred_element_type=jnp.float32)   # (2*Nb, Cr_pad)
        h = jnp.maximum(h + fc1_b_ref[...], 0.0)
        mlp = jnp.dot(h, fc2_wt_ref[...],
                      preferred_element_type=jnp.float32) # (2*Nb, C)
        mlp = mlp + fc2_b_ref[...]
        ch_att = jax.nn.sigmoid(mlp[:Nb] + mlp[Nb:])      # (Nb, C)

        if xb.dtype == jnp.float32:
            x_ch = xf * ch_att[:, :, None]                # (Nb, C, HW) f32
        else:
            # keep the large gate multiply in the narrow dtype (v6e/v7x bf16 VPU)
            x_ch = xb * ch_att[:, :, None].astype(xb.dtype)

        # ---------------- spatial attention (MXU conv) -----------------------
        x_sp = x_ch.astype(jnp.float32)
        avg_sp = jnp.mean(x_sp, axis=1)                   # (Nb, HW)
        max_sp = jnp.max(x_sp, axis=1)                    # (Nb, HW)
        sp_cat = jnp.concatenate([avg_sp, max_sp], axis=1)        # (Nb, 2*HW)

        conv = jnp.dot(sp_cat, convmat_ref[...],
                       preferred_element_type=jnp.float32)        # (Nb, HW)
        conv = conv + convb_ref[0]                        # SMEM scalar bias
        spatial_att = jax.nn.sigmoid(conv)

        if xb.dtype == jnp.float32:
            o_ref[...] = (x_ch * spatial_att[:, None, :]).astype(o_ref.dtype)
        else:
            o_ref[...] = (x_ch *
                          spatial_att[:, None, :].astype(xb.dtype)).astype(o_ref.dtype)

    return kernel


def _make_cbam_kernel_roll(Nb, H, W, K=7, PAD=3):
    """Fallback for large HW (dense conv matrix too big): roll+mask conv with
    avg/max stacked along sublanes (one roll per tap) and per-tap masks."""
    HW = H * W

    def kernel(x_ref, fc1_wt_ref, fc1_b_ref, fc2_wt_ref, fc2_b_ref,
               convw_ref, convb_ref, o_ref):
        xb = x_ref[...]
        xf = xb.astype(jnp.float32)

        avg_pool = jnp.mean(xf, axis=2)
        max_pool = jnp.max(xf, axis=2)
        pooled = jnp.concatenate([avg_pool, max_pool], axis=0)

        h = jnp.maximum(jnp.dot(pooled, fc1_wt_ref[...],
                                preferred_element_type=jnp.float32)
                        + fc1_b_ref[...], 0.0)
        mlp = jnp.dot(h, fc2_wt_ref[...],
                      preferred_element_type=jnp.float32) + fc2_b_ref[...]
        ch_att = jax.nn.sigmoid(mlp[:Nb] + mlp[Nb:])

        if xb.dtype == jnp.float32:
            x_ch = xf * ch_att[:, :, None]
        else:
            x_ch = xb * ch_att[:, :, None].astype(xb.dtype)

        x_sp = x_ch.astype(jnp.float32)
        avg_sp = jnp.mean(x_sp, axis=1)                   # (Nb, HW)
        max_sp = jnp.max(x_sp, axis=1)                    # (Nb, HW)

        # Stack avg/max along sublanes -> one roll per tap (halves XLU traffic).
        stacked = jnp.concatenate([avg_sp, max_sp], axis=0)        # (2*Nb, HW)
        is_avg = lax.broadcasted_iota(jnp.int32, (2 * Nb, 1), 0) < Nb
        pos = lax.broadcasted_iota(jnp.int32, (1, HW), 1)
        row = pos // W
        col = pos % W

        accs = [jnp.zeros((2 * Nb, HW), jnp.float32) for _ in range(2)]
        k = 0
        for dy in range(K):
            for dx in range(K):
                shift = ((PAD - dy) * W + (PAD - dx)) % HW
                s = pltpu.roll(stacked, shift, 1) if shift else stacked
                w = jnp.where(is_avg, convw_ref[dy * K + dx],
                              convw_ref[K * K + dy * K + dx])       # (2*Nb, 1)
                # per-tap mask recompute keeps vreg pressure low
                mask = ((row >= (PAD - dy)) & (row < H + (PAD - dy)) &
                        (col >= (PAD - dx)) & (col < W + (PAD - dx)))
                accs[k & 1] = accs[k & 1] + jnp.where(mask, w * s, 0.0)
                k += 1

        conv_full = accs[0] + accs[1]                      # (2*Nb, HW)
        conv = conv_full[:Nb] + conv_full[Nb:] + convb_ref[0]
        spatial_att = jax.nn.sigmoid(conv)

        if xb.dtype == jnp.float32:
            o_ref[...] = (x_ch * spatial_att[:, None, :]).astype(o_ref.dtype)
        else:
            o_ref[...] = (x_ch *
                          spatial_att[:, None, :].astype(xb.dtype)).astype(o_ref.dtype)

    return kernel


# ----------------------------------------------------------------------------
# Wrapper helpers
# ----------------------------------------------------------------------------
def _vmem_capacity_bytes():
    try:
        return int(pltpu.get_tpu_info().vmem_capacity_bytes)
    except Exception:
        return 64 << 20   # conservative fallback (v7x-sized VMEM)


def _pick_nb(N, C, HW, itemsize, vmem_cap, want_two_steps,
             target_block_bytes=8 << 20):
    """Batch images per grid step: largest block that (a) fits ~7x live copies
    inside ~70% of VMEM, (b) stays near an ~8 MiB input block (past the HBM
    roofline knee, amortizes the ~0.35us/step overhead)."""
    per_image_in = max(1, C * HW * itemsize)
    per_image_f32 = max(1, C * HW * 4)
    usable = int(vmem_cap * 0.70)                         # headroom for weights/scratch
    nb_vmem = max(1, usable // (7 * per_image_f32))       # ~7x: 2 in + 2 out + f32 temps
    nb_target = max(1, target_block_bytes // per_image_in)
    nb = max(1, min(N, nb_vmem, nb_target))
    if want_two_steps and N >= 2:
        nb = min(nb, (N + 1) // 2)                        # >=2 steps to feed both TCs
    return nb


def _build_conv_matrix(conv_w, H, W, K=7, PAD=3):
    """Bake the 2->1 channel 7x7 conv (with zero padding) into a dense
    (2*HW, HW) matrix so conv = [avg_sp | max_sp] @ Wstack."""
    HW = H * W
    pos = jnp.arange(HW)
    r = pos // W
    c = pos % W
    # rows = input position, cols = output position
    dr = r[:, None] - r[None, :] + PAD                    # dy = r_in - r_out + PAD
    dc = c[:, None] - c[None, :] + PAD                    # dx = c_in - c_out + PAD
    valid = (dr >= 0) & (dr < K) & (dc >= 0) & (dc < K)
    dy = jnp.clip(dr, 0, K - 1)
    dx = jnp.clip(dc, 0, K - 1)
    w_a = conv_w[0, 0].astype(jnp.float32)                # (K, K)
    w_m = conv_w[0, 1].astype(jnp.float32)
    w_avg = jnp.where(valid, w_a[dy, dx], 0.0)            # (HW, HW)
    w_max = jnp.where(valid, w_m[dy, dx], 0.0)            # (HW, HW)
    return jnp.concatenate([w_avg, w_max], axis=0)        # (2*HW, HW)


# ----------------------------------------------------------------------------
# Public entry point
# ----------------------------------------------------------------------------
def cbam_pallas(x, fc1_w, fc1_b, fc2_w, fc2_b, conv_w, conv_b):
    N, C, H, W = x.shape
    Cr = fc1_w.shape[0]
    HW = H * W
    K, PAD = 7, 3
    itemsize = jnp.dtype(x.dtype).itemsize
    f32 = jnp.float32

    vmem_cap = _vmem_capacity_bytes()
    # Small-VMEM parts (v7x-like) have 2 TensorCores: keep >=2 grid steps there;
    # on 128 MiB single-TC parts (v5e/v6e) a split is pure per-step overhead.
    want_two_steps = vmem_cap <= (80 << 20)

    Nb = _pick_nb(N, C, HW, itemsize, vmem_cap, want_two_steps)
    n_steps = pl.cdiv(N, Nb)
    N_pad = n_steps * Nb

    # Lane-dense view of x; all reshapes/pads in the wrapper.
    x3 = x.reshape(N, C, HW)
    if N_pad != N:
        x3 = jnp.pad(x3, ((0, N_pad - N), (0, 0), (0, 0)))

    # MLP weights: transpose + zero-pad the reduced dim to a full 128 lanes.
    Cr_pad = max(128, pl.cdiv(Cr, 128) * 128)
    fc1_wt = jnp.zeros((C, Cr_pad), f32).at[:, :Cr].set(fc1_w.T.astype(f32))
    fc1_b2 = jnp.zeros((1, Cr_pad), f32).at[:, :Cr].set(fc1_b.astype(f32))
    fc2_wt = jnp.zeros((Cr_pad, C), f32).at[:Cr, :].set(fc2_w.T.astype(f32))
    fc2_b2 = fc2_b.reshape(1, C).astype(f32)
    convb_flat = conv_b.reshape(-1).astype(f32)            # (1,)

    # Use the MXU conv-matrix path when both (HW,HW) matrices are cheap in VMEM.
    use_matmul_conv = (2 * HW * HW * 4) <= (8 << 20)

    smem = pltpu.MemorySpace.SMEM
    common_in_specs = [
        pl.BlockSpec((Nb, C, HW), lambda n: (n, 0, 0)),     # x (lane-dense)
        pl.BlockSpec((C, Cr_pad), lambda n: (0, 0)),        # fc1_w.T (padded)
        pl.BlockSpec((1, Cr_pad), lambda n: (0, 0)),        # fc1_b
        pl.BlockSpec((Cr_pad, C), lambda n: (0, 0)),        # fc2_w.T (padded)
        pl.BlockSpec((1, C), lambda n: (0, 0)),             # fc2_b
    ]

    if use_matmul_conv:
        convmat = _build_conv_matrix(conv_w, H, W, K, PAD)  # (2*HW, HW) f32
        kernel = _make_cbam_kernel_matmul(Nb)
        extra_inputs = (convmat, convb_flat)
        extra_specs = [pl.BlockSpec((2 * HW, HW), lambda n: (0, 0)),
                       pl.BlockSpec(memory_space=smem)]
        conv_weight_bytes = 2 * HW * HW * 4
    else:
        convw_flat = conv_w.reshape(-1).astype(f32)         # (2*K*K,)
        kernel = _make_cbam_kernel_roll(Nb, H, W, K, PAD)
        extra_inputs = (convw_flat, convb_flat)
        extra_specs = [pl.BlockSpec(memory_space=smem),
                       pl.BlockSpec(memory_space=smem)]
        conv_weight_bytes = 0

    block_f32 = Nb * C * HW * 4
    weight_bytes = conv_weight_bytes + 2 * C * Cr_pad * 4
    vmem_limit = int(min(vmem_cap * 0.85,
                         max(48 << 20, 8 * block_f32 + 2 * weight_bytes + (16 << 20))))

    out = pl.pallas_call(
        kernel,
        out_shape=jax.ShapeDtypeStruct((N_pad, C, HW), x.dtype),
        grid=(n_steps,),
        in_specs=common_in_specs + extra_specs,
        out_specs=pl.BlockSpec((Nb, C, HW), lambda n: (n, 0, 0)),
        compiler_params=pltpu.CompilerParams(
            dimension_semantics=("parallel",),
            vmem_limit_bytes=vmem_limit,
        ),
    )(x3, fc1_wt, fc1_b2, fc2_wt, fc2_b2, *extra_inputs)

    return out[:N].reshape(N, C, H, W)


# ----------------------------------------------------------------------------
# Pure-JAX reference mirroring the PyTorch forward
# ----------------------------------------------------------------------------
def cbam_ref(x, fc1_w, fc1_b, fc2_w, fc2_b, conv_w, conv_b):
    avg_p = jnp.mean(x, axis=(2, 3))                 # AdaptiveAvgPool2d(1).squeeze()
    max_p = jnp.max(x, axis=(2, 3))                  # AdaptiveMaxPool2d(1).squeeze()

    def mlp(v):
        return jnp.maximum(v @ fc1_w.T + fc1_b, 0.0) @ fc2_w.T + fc2_b

    ch = jax.nn.sigmoid(mlp(avg_p) + mlp(max_p))[:, :, None, None]
    xc = x * ch
    sp_in = jnp.concatenate([jnp.mean(xc, axis=1, keepdims=True),
                             jnp.max(xc, axis=1, keepdims=True)], axis=1)
    sp = lax.conv_general_dilated(sp_in, conv_w, window_strides=(1, 1),
                                  padding=((3, 3), (3, 3)),
                                  dimension_numbers=("NCHW", "OIHW", "NCHW"))
    sp = sp + conv_b.reshape(1, 1, 1, 1)
    return xc * jax.nn.sigmoid(sp)


if __name__ == "__main__":
    key = jax.random.PRNGKey(0)
    N, C, H, W = 2, 32, 16, 16
    reduction = 16
    Cr = C // reduction

    ks = jax.random.split(key, 7)
    x      = jax.random.normal(ks[0], (N, C, H, W), jnp.float32)
    fc1_w  = jax.random.normal(ks[1], (Cr, C), jnp.float32) * 0.1
    fc1_b  = jax.random.normal(ks[2], (Cr,), jnp.float32) * 0.1
    fc2_w  = jax.random.normal(ks[3], (C, Cr), jnp.float32) * 0.1
    fc2_b  = jax.random.normal(ks[4], (C,), jnp.float32) * 0.1
    conv_w = jax.random.normal(ks[5], (1, 2, 7, 7), jnp.float32) * 0.1   # OIHW
    conv_b = jax.random.normal(ks[6], (1,), jnp.float32) * 0.1

    out = cbam_pallas(x, fc1_w, fc1_b, fc2_w, fc2_b, conv_w, conv_b)
    out = jax.block_until_ready(out)

    ref = cbam_ref(x, fc1_w, fc1_b, fc2_w, fc2_b, conv_w, conv_b)
    np.testing.assert_allclose(np.asarray(out), np.asarray(ref), rtol=5e-5, atol=5e-5)
    print("KERNEL_OK")
</pallas_src>

<mosaic_0001>
module attributes {stable_mosaic.version = 11 : i64} {
  func.func @kernel(%arg0: i32, %arg1: memref<1x32x256xf32, #tpu.memory_space<vmem>>, %arg2: memref<32x128xf32, #tpu.memory_space<vmem>>, %arg3: memref<1x128xf32, #tpu.memory_space<vmem>>, %arg4: memref<128x32xf32, #tpu.memory_space<vmem>>, %arg5: memref<1x32xf32, #tpu.memory_space<vmem>>, %arg6: memref<512x256xf32, #tpu.memory_space<vmem>>, %arg7: memref<1xf32, #tpu.memory_space<smem>>, %arg8: memref<1x32x256xf32, #tpu.memory_space<vmem>>) attributes {dimension_semantics = [#tpu.dimension_semantics<parallel>], iteration_bounds = array<i64: 2>, scalar_prefetch = 0 : i64, scratch_operands = 0 : i64, tpu.core_type = #tpu.core_type<tc>, window_params = [{transform_indices = @transform_0, window_bounds = array<i64: 1, 32, 256>}, {pipeline_mode = #tpu.pipeline_mode<synchronous>, transform_indices = @transform_1, window_bounds = array<i64: 32, 128>}, {pipeline_mode = #tpu.pipeline_mode<synchronous>, transform_indices = @transform_2, window_bounds = array<i64: 1, 128>}, {pipeline_mode = #tpu.pipeline_mode<synchronous>, transform_indices = @transform_3, window_bounds = array<i64: 128, 32>}, {pipeline_mode = #tpu.pipeline_mode<synchronous>, transform_indices = @transform_4, window_bounds = array<i64: 1, 32>}, {pipeline_mode = #tpu.pipeline_mode<synchronous>, transform_indices = @transform_5, window_bounds = array<i64: 512, 256>}, {transform_indices = @transform_6, window_bounds = array<i64: 1>}, {transform_indices = @transform_7, window_bounds = array<i64: 1, 32, 256>}]} {
    %c0 = arith.constant 0 : index
    %c0_0 = arith.constant 0 : index
    %c0_1 = arith.constant 0 : index
    %0 = vector.load %arg1[%c0, %c0_0, %c0_1] : memref<1x32x256xf32, #tpu.memory_space<vmem>>, vector<1x32x256xf32>
    %cst = arith.constant dense<0.000000e+00> : vector<1x32xf32>
    %1 = vector.multi_reduction <add>, %0, %cst [2] : vector<1x32x256xf32> to vector<1x32xf32>
    %cst_2 = arith.constant 2.560000e+02 : f32
    %2 = vector.broadcast %cst_2 : f32 to vector<1x32xf32>
    %3 = arith.divf %1, %2 : vector<1x32xf32>
    %cst_3 = arith.constant dense<0xFF800000> : vector<1x32xf32>
    %4 = vector.multi_reduction <maximumf>, %0, %cst_3 [2] : vector<1x32x256xf32> to vector<1x32xf32>
    %5 = tpu.concatenate %3, %4 in 0 : vector<1x32xf32>, vector<1x32xf32> -> vector<2x32xf32>
    %c0_4 = arith.constant 0 : index
    %c0_5 = arith.constant 0 : index
    %6 = vector.load %arg2[%c0_4, %c0_5] : memref<32x128xf32, #tpu.memory_space<vmem>>, vector<32x128xf32>
    %cst_6 = arith.constant dense<0.000000e+00> : vector<2x128xf32>
    %7 = tpu.matmul %5, %6, %cst_6 {dimension_numbers = #tpu.dot_dimension_numbers<[1], [0], [0], [1], [0, 0, 1, 1], [], []>} : vector<2x32xf32>, vector<32x128xf32>, vector<2x128xf32> -> vector<2x128xf32>
    %c0_7 = arith.constant 0 : index
    %c0_8 = arith.constant 0 : index
    %8 = vector.load %arg3[%c0_7, %c0_8] : memref<1x128xf32, #tpu.memory_space<vmem>>, vector<1x128xf32>
    %9 = vector.broadcast %8 : vector<1x128xf32> to vector<2x128xf32>
    %10 = arith.addf %7, %9 : vector<2x128xf32>
    %cst_9 = arith.constant 0.000000e+00 : f32
    %11 = vector.broadcast %cst_9 : f32 to vector<2x128xf32>
    %12 = arith.maximumf %10, %11 : vector<2x128xf32>
    %c0_10 = arith.constant 0 : index
    %c0_11 = arith.constant 0 : index
    %13 = vector.load %arg4[%c0_10, %c0_11] : memref<128x32xf32, #tpu.memory_space<vmem>>, vector<128x32xf32>
    %cst_12 = arith.constant dense<0.000000e+00> : vector<2x32xf32>
    %14 = tpu.matmul %12, %13, %cst_12 {dimension_numbers = #tpu.dot_dimension_numbers<[1], [0], [0], [1], [0, 0, 1, 1], [], []>} : vector<2x128xf32>, vector<128x32xf32>, vector<2x32xf32> -> vector<2x32xf32>
    %c0_13 = arith.constant 0 : index
    %c0_14 = arith.constant 0 : index
    %15 = vector.load %arg5[%c0_13, %c0_14] : memref<1x32xf32, #tpu.memory_space<vmem>>, vector<1x32xf32>
    %16 = vector.broadcast %15 : vector<1x32xf32> to vector<2x32xf32>
    %17 = arith.addf %14, %16 : vector<2x32xf32>
    %18 = vector.extract_strided_slice %17 {offsets = [0, 0], sizes = [1, 32], strides = [1, 1]} : vector<2x32xf32> to vector<1x32xf32>
    %19 = vector.extract_strided_slice %17 {offsets = [1, 0], sizes = [1, 32], strides = [1, 1]} : vector<2x32xf32> to vector<1x32xf32>
    %20 = arith.addf %18, %19 : vector<1x32xf32>
    %21 = arith.negf %20 : vector<1x32xf32>
    %22 = math.exp %21 : vector<1x32xf32>
    %cst_15 = arith.constant 1.000000e+00 : f32
    %23 = vector.broadcast %cst_15 : f32 to vector<1x32xf32>
    %24 = arith.addf %23, %22 : vector<1x32xf32>
    %25 = arith.divf %23, %24 : vector<1x32xf32>
    %26 = vector.shape_cast %25 : vector<1x32xf32> to vector<1x32x1xf32>
    %27 = vector.broadcast %26 : vector<1x32x1xf32> to vector<1x32x256xf32>
    %28 = arith.mulf %0, %27 : vector<1x32x256xf32>
    %cst_16 = arith.constant dense<0.000000e+00> : vector<1x256xf32>
    %29 = vector.multi_reduction <add>, %28, %cst_16 [1] : vector<1x32x256xf32> to vector<1x256xf32>
    %cst_17 = arith.constant 3.200000e+01 : f32
    %30 = vector.broadcast %cst_17 : f32 to vector<1x256xf32>
    %31 = arith.divf %29, %30 : vector<1x256xf32>
    %cst_18 = arith.constant dense<0xFF800000> : vector<1x256xf32>
    %32 = vector.multi_reduction <maximumf>, %28, %cst_18 [1] : vector<1x32x256xf32> to vector<1x256xf32>
    %33 = tpu.concatenate %31, %32 in 1 : vector<1x256xf32>, vector<1x256xf32> -> vector<1x512xf32>
    %c0_19 = arith.constant 0 : index
    %c0_20 = arith.constant 0 : index
    %34 = vector.load %arg6[%c0_19, %c0_20] : memref<512x256xf32, #tpu.memory_space<vmem>>, vector<512x256xf32>
    %cst_21 = arith.constant dense<0.000000e+00> : vector<1x256xf32>
    %35 = tpu.matmul %33, %34, %cst_21 {dimension_numbers = #tpu.dot_dimension_numbers<[1], [0], [0], [1], [0, 0, 1, 1], [], []>} : vector<1x512xf32>, vector<512x256xf32>, vector<1x256xf32> -> vector<1x256xf32>
    %c0_22 = arith.constant 0 : index
    %36 = memref.load %arg7[%c0_22] : memref<1xf32, #tpu.memory_space<smem>>
    %37 = vector.broadcast %36 : f32 to vector<1x256xf32>
    %38 = arith.addf %35, %37 : vector<1x256xf32>
    %39 = arith.negf %38 : vector<1x256xf32>
    %40 = math.exp %39 : vector<1x256xf32>
    %cst_23 = arith.constant 1.000000e+00 : f32
    %41 = vector.broadcast %cst_23 : f32 to vector<1x256xf32>
    %42 = arith.addf %41, %40 : vector<1x256xf32>
    %43 = arith.divf %41, %42 : vector<1x256xf32>
    %44 = vector.shape_cast %43 : vector<1x256xf32> to vector<1x1x256xf32>
    %45 = vector.broadcast %44 : vector<1x1x256xf32> to vector<1x32x256xf32>
    %46 = arith.mulf %28, %45 : vector<1x32x256xf32>
    %c0_24 = arith.constant 0 : index
    %c0_25 = arith.constant 0 : index
    %c0_26 = arith.constant 0 : index
    %47 = vector.load %arg8[%c0_24, %c0_25, %c0_26] : memref<1x32x256xf32, #tpu.memory_space<vmem>>, vector<1x32x256xf32>
    tpu.vector_store %arg8[%c0_24, %c0_25, %c0_26], %46 {strides = array<i32>} : memref<1x32x256xf32, #tpu.memory_space<vmem>>, vector<1x32x256xf32>,
    return
  }
  func.func @transform_0(%arg0: i32) -> (i32, i32, i32) {
    %c0_i32 = arith.constant 0 : i32
    %c0_i32_0 = arith.constant 0 : i32
    %c0_i32_1 = arith.constant 0 : i32
    return %arg0, %c0_i32, %c0_i32_0 : i32, i32, i32
  }
  func.func @transform_1(%arg0: i32) -> (i32, i32) {
    %c0_i32 = arith.constant 0 : i32
    %c0_i32_0 = arith.constant 0 : i32
    %c0_i32_1 = arith.constant 0 : i32
    return %c0_i32, %c0_i32_0 : i32, i32
  }
  func.func @transform_2(%arg0: i32) -> (i32, i32) {
    %c0_i32 = arith.constant 0 : i32
    %c0_i32_0 = arith.constant 0 : i32
    %c0_i32_1 = arith.constant 0 : i32
    return %c0_i32, %c0_i32_0 : i32, i32
  }
  func.func @transform_3(%arg0: i32) -> (i32, i32) {
    %c0_i32 = arith.constant 0 : i32
    %c0_i32_0 = arith.constant 0 : i32
    %c0_i32_1 = arith.constant 0 : i32
    return %c0_i32, %c0_i32_0 : i32, i32
  }
  func.func @transform_4(%arg0: i32) -> (i32, i32) {
    %c0_i32 = arith.constant 0 : i32
    %c0_i32_0 = arith.constant 0 : i32
    %c0_i32_1 = arith.constant 0 : i32
    return %c0_i32, %c0_i32_0 : i32, i32
  }
  func.func @transform_5(%arg0: i32) -> (i32, i32) {
    %c0_i32 = arith.constant 0 : i32
    %c0_i32_0 = arith.constant 0 : i32
    %c0_i32_1 = arith.constant 0 : i32
    return %c0_i32, %c0_i32_0 : i32, i32
  }
  func.func @transform_6(%arg0: i32) -> i32 {
    %c0_i32 = arith.constant 0 : i32
    %c0_i32_0 = arith.constant 0 : i32
    return %c0_i32 : i32
  }
  func.func @transform_7(%arg0: i32) -> (i32, i32, i32) {
    %c0_i32 = arith.constant 0 : i32
    %c0_i32_0 = arith.constant 0 : i32
    %c0_i32_1 = arith.constant 0 : i32
    return %arg0, %c0_i32, %c0_i32_0 : i32, i32, i32
  }
}

</mosaic_0001>

<llo_original>
// kernel: tpu_custom_call.1
$region0: #{tpu_custom_call.1}
  #allocation0 [shape = 'u32[]', space=smem, size = 0x4, offset = 0x4, fixed_abs, tag = 'smem constant byte address 0x4 - core index']
  #allocation1 [shape = 'u32[144,128]{1,0:T(1,128)}', space=vmem, size = 0x12000, scoped, tag = 'internal scratch']
  #allocation2 [shape = 'f32[1]{0:T(128)S(6)}', space=smem, size = 0x200, scoped, tag = 'scoped memory for tpu_custom_call.1']
  %s0 = inlined_call_operand.vmem [shape: f32[2,32,256], index: 0, kind: input, shape index: {}]
  %s1 = inlined_call_operand.vmem [shape: f32[32,128], index: 1, kind: input, shape index: {}]
  %s2 = inlined_call_operand.vmem [shape: f32[1,128], index: 2, kind: input, shape index: {}]
  %s3 = inlined_call_operand.vmem [shape: f32[128,32], index: 3, kind: input, shape index: {}]
  %s4 = inlined_call_operand.vmem [shape: f32[1,32], index: 4, kind: input, shape index: {}]
  %s5 = inlined_call_operand.hbm [shape: f32[512,256], index: 5, kind: input, shape index: {}]
  %s6 = inlined_call_operand.<no memory space> [shape: f32[1], index: 6, kind: input, shape index: {}]
  %s7 = inlined_call_operand.hbm [shape: f32[2,32,256], index: 7, kind: output, shape index: {}]
  %s8 = sld [smem:[#allocation0]]
  $region65: #{tpu_custom_call.1} parent=0
    _
  %s10 = ssub.s32 1, %s8
  %s11 = scalar_select 0, %s10, %s8
  %12 = sst [smem:[#allocation2]] %s6
  $region1: #{tpu_custom_call.1} parent=0
    #allocation3 [shape = 'u8[524288]{0}', space=vmem, size = 0x80000, scoped, tag = 'input window, operand 5, single buffered']
    #allocation4 [shape = 's32[2]{0}', space=sflag, size = 0x8, scoped, tag = 'scoped memory for tpu_custom_call.1']
    #allocation5 [shape = 's32[2]{0}', space=sflag, size = 0x8, scoped, tag = 'scoped memory for tpu_custom_call.1']
    #allocation6 [shape = 'u8[65536]{0}', space=vmem, size = 0x10000, scoped, tag = 'output window, operand 0']
    %13 = vsyncpa [#allocation4], 0
    %14 = vsyncpa [#allocation5], 0
    %s15 = scalar_lea.sflag [#allocation5], 1
    %16 = vsyncpa %s15, 0
    loop: start=0, step=1, limit=4
    $region2: #{tpu_custom_call.1} parent=1 // loop_pre_header
      _
    $region3: #{tpu_custom_call.1} parent=1 // loop_header
      %s18 = sphi 0, %s22
      %p19 = scmp.ge.s32.totalorder %s18, 4
      %s28 = sphi 0, %s30
      %s31 = sphi 0, %s28
      %s32 = sphi 0, %s31
      %s48 = sphi 0, %s32
      %s52 = sphi 0, %s52
      %s54 = sphi 0, %s52
      %s55 = sphi 0, %s54
      %s69 = sphi 0, %s55
      %s73 = sphi 0, %s73
      %s75 = sphi 0, %s73
      %s76 = sphi 0, %s75
      %s90 = sphi 0, %s76
      %s94 = sphi 0, %s94
      %s96 = sphi 0, %s94
      %s97 = sphi 0, %s96
      %s111 = sphi 0, %s97
      %s115 = sphi 0, %s115
      %s117 = sphi 0, %s115
      %s118 = sphi 0, %s117
      %s132 = sphi 0, %s118
      %s136 = sphi 0, %s136
      %s138 = sphi 0, %s136
      %s139 = sphi 0, %s138
      %s153 = sphi 0, %s139
      %s157 = sphi 0, %s157
      %s159 = sphi 0, %s157
      %s160 = sphi 0, %s159
      %s174 = sphi 0, %s160
      %s180 = sphi 0, %s182
      %s183 = sphi 0, %s180
      %s184 = sphi 0, %s183
      %s200 = sphi 0, %s184
    $region4: #{tpu_custom_call.1} parent=1 // loop_header_branch
      %21 = sbr.rel (%p19) target = $region8
    $region5: #{tpu_custom_call.1} parent=1 // loop_body
      %s23 = ssub.s32 %s18, 1
      %s24 = ssub.s32 %s18, 2
      %s25 = sadd.s32 %s18, 1
      %s26 = ssub.s32 %s18, %s25
      %p27 = scmp.eq.s32.totalorder %s26, 0
      %s29 = sadd.s32 %s28, 1
      %s30 = scalar_select %p27, %s28, %s29
      %p33 = pneg %p27
      %p34 = scmp.eq.s32.totalorder %s18, 1
      %p35 = por %p33, %p34
      %p36 = scmp.ne.s32.totalorder %s28, %s31
      %p37 = scmp.eq.s32.totalorder %s18, 0
      %p38 = por %p36, %p37
      %p39 = scmp.ne.s32.totalorder %s28, %s31
      %p40 = scmp.eq.s32.totalorder %s23, 1
      %p41 = por %p39, %p40
      %p42 = scmp.ne.s32.totalorder %s31, %s32
      %p43 = scmp.eq.s32.totalorder %s23, 0
      %p44 = por %p42, %p43
      %p45 = scmp.ne.s32.totalorder %s31, %s32
      %p46 = scmp.eq.s32.totalorder %s24, 1
      %p47 = por %p45, %p46
      %p49 = scmp.ne.s32.totalorder %s32, %s48
      %p50 = scmp.eq.s32.totalorder %s24, 0
      %p51 = por %p49, %p50
      %s53 = sadd.s32 %s52, 1
      %p56 = scmp.eq.s32.totalorder %s18, 1
      %p57 = scmp.ne.s32.totalorder %s52, %s54
      %p58 = scmp.eq.s32.totalorder %s18, 0
      %p59 = por %p57, %p58
      %p60 = scmp.ne.s32.totalorder %s52, %s54
      %p61 = scmp.eq.s32.totalorder %s23, 1
      %p62 = por %p60, %p61
      %p63 = scmp.ne.s32.totalorder %s54, %s55
      %p64 = scmp.eq.s32.totalorder %s23, 0
      %p65 = por %p63, %p64
      %p66 = scmp.ne.s32.totalorder %s54, %s55
      %p67 = scmp.eq.s32.totalorder %s24, 1
      %p68 = por %p66, %p67
      %p70 = scmp.ne.s32.totalorder %s55, %s69
      %p71 = scmp.eq.s32.totalorder %s24, 0
      %p72 = por %p70, %p71
      %s74 = sadd.s32 %s73, 1
      %p77 = scmp.eq.s32.totalorder %s18, 1
      %p78 = scmp.ne.s32.totalorder %s73, %s75
      %p79 = scmp.eq.s32.totalorder %s18, 0
      %p80 = por %p78, %p79
      %p81 = scmp.ne.s32.totalorder %s73, %s75
      %p82 = scmp.eq.s32.totalorder %s23, 1
      %p83 = por %p81, %p82
      %p84 = scmp.ne.s32.totalorder %s75, %s76
      %p85 = scmp.eq.s32.totalorder %s23, 0
      %p86 = por %p84, %p85
      %p87 = scmp.ne.s32.totalorder %s75, %s76
      %p88 = scmp.eq.s32.totalorder %s24, 1
      %p89 = por %p87, %p88
      %p91 = scmp.ne.s32.totalorder %s76, %s90
      %p92 = scmp.eq.s32.totalorder %s24, 0
      %p93 = por %p91, %p92
      %s95 = sadd.s32 %s94, 1
      %p98 = scmp.eq.s32.totalorder %s18, 1
      %p99 = scmp.ne.s32.totalorder %s94, %s96
      %p100 = scmp.eq.s32.totalorder %s18, 0
      %p101 = por %p99, %p100
      %p102 = scmp.ne.s32.totalorder %s94, %s96
      %p103 = scmp.eq.s32.totalorder %s23, 1
      %p104 = por %p102, %p103
      %p105 = scmp.ne.s32.totalorder %s96, %s97
      %p106 = scmp.eq.s32.totalorder %s23, 0
      %p107 = por %p105, %p106
      %p108 = scmp.ne.s32.totalorder %s96, %s97
      %p109 = scmp.eq.s32.totalorder %s24, 1
      %p110 = por %p108, %p109
      %p112 = scmp.ne.s32.totalorder %s97, %s111
      %p113 = scmp.eq.s32.totalorder %s24, 0
      %p114 = por %p112, %p113
      %s116 = sadd.s32 %s115, 1
      %p119 = scmp.eq.s32.totalorder %s18, 1
      %p120 = scmp.ne.s32.totalorder %s115, %s117
      %p121 = scmp.eq.s32.totalorder %s18, 0
      %p122 = por %p120, %p121
      %p123 = scmp.ne.s32.totalorder %s115, %s117
      %p124 = scmp.eq.s32.totalorder %s23, 1
      %p125 = por %p123, %p124
      %p126 = scmp.ne.s32.totalorder %s117, %s118
      %p127 = scmp.eq.s32.totalorder %s23, 0
      %p128 = por %p126, %p127
      %p129 = scmp.ne.s32.totalorder %s117, %s118
      %p130 = scmp.eq.s32.totalorder %s24, 1
      %p131 = por %p129, %p130
      %p133 = scmp.ne.s32.totalorder %s118, %s132
      %p134 = scmp.eq.s32.totalorder %s24, 0
      %p135 = por %p133, %p134
      %s137 = sadd.s32 %s136, 1
      %p140 = scmp.eq.s32.totalorder %s18, 1
      %p141 = scmp.ne.s32.totalorder %s136, %s138
      %p142 = scmp.eq.s32.totalorder %s18, 0
      %p143 = por %p141, %p142
      %p144 = scmp.ne.s32.totalorder %s136, %s138
      %p145 = scmp.eq.s32.totalorder %s23, 1
      %p146 = por %p144, %p145
      %p147 = scmp.ne.s32.totalorder %s138, %s139
      %p148 = scmp.eq.s32.totalorder %s23, 0
      %p149 = por %p147, %p148
      %p150 = scmp.ne.s32.totalorder %s138, %s139
      %p151 = scmp.eq.s32.totalorder %s24, 1
      %p152 = por %p150, %p151
      %p154 = scmp.ne.s32.totalorder %s139, %s153
      %p155 = scmp.eq.s32.totalorder %s24, 0
      %p156 = por %p154, %p155
      %s158 = sadd.s32 %s157, 1
      %p161 = scmp.eq.s32.totalorder %s18, 1
      %p162 = scmp.ne.s32.totalorder %s157, %s159
      %p163 = scmp.eq.s32.totalorder %s18, 0
      %p164 = por %p162, %p163
      %p165 = scmp.ne.s32.totalorder %s157, %s159
      %p166 = scmp.eq.s32.totalorder %s23, 1
      %p167 = por %p165, %p166
      %p168 = scmp.ne.s32.totalorder %s159, %s160
      %p169 = scmp.eq.s32.totalorder %s23, 0
      %p170 = por %p168, %p169
      %p171 = scmp.ne.s32.totalorder %s159, %s160
      %p172 = scmp.eq.s32.totalorder %s24, 1
      %p173 = por %p171, %p172
      %p175 = scmp.ne.s32.totalorder %s160, %s174
      %p176 = scmp.eq.s32.totalorder %s24, 0
      %p177 = por %p175, %p176
      %s178 = ssub.s32 %s18, %s25
      %p179 = scmp.eq.s32.totalorder %s178, 0
      %s181 = sadd.s32 %s180, 1
      %s182 = scalar_select %p179, %s180, %s181
      %p185 = pneg %p179
      %p186 = scmp.eq.s32.totalorder %s18, 1
      %p187 = por %p185, %p186
      %p188 = scmp.ne.s32.totalorder %s180, %s183
      %p189 = scmp.eq.s32.totalorder %s18, 0
      %p190 = por %p188, %p189
      %p191 = scmp.ne.s32.totalorder %s180, %s183
      %p192 = scmp.eq.s32.totalorder %s23, 1
      %p193 = por %p191, %p192
      %p194 = scmp.ne.s32.totalorder %s183, %s184
      %p195 = scmp.eq.s32.totalorder %s23, 0
      %p196 = por %p194, %p195
      %p197 = scmp.ne.s32.totalorder %s183, %s184
      %p198 = scmp.eq.s32.totalorder %s24, 1
      %p199 = por %p197, %p198
      %p201 = scmp.ne.s32.totalorder %s184, %s200
      %p202 = scmp.eq.s32.totalorder %s24, 0
      %p203 = por %p201, %p202
      %p204 = scmp.le.s32.totalorder 1, %s18
      %p205 = scmp.lt.s32.totalorder %s18, 3
      %p206 = pnand %p204, %p205
      %p207 = pneg %p206
      // Predicated region
      $region9: #{tpu_custom_call.1} parent=5 // pred_check
        _
      $region10: #{tpu_custom_call.1} parent=5 // pred_check_branch
        %209 = sbr.rel (%p206) target = $region12
      $region11: #{tpu_custom_call.1} parent=5 // pred_region
        %s210 = ssub.s32 %s18, 1
        // Predicated region
        $region13: #{tpu_custom_call.1} parent=11 // pred_check
          %p211 = pneg %p65
        $region14: #{tpu_custom_call.1} parent=11 // pred_check_branch
          %213 = sbr.rel (%p211) target = $region16
        $region15: #{tpu_custom_call.1} parent=11 // pred_region
          _
        $region16: #{tpu_custom_call.1} parent=11 // pred_fallthru
          _
        // Predicated region
        $region17: #{tpu_custom_call.1} parent=11 // pred_check
          %p214 = pneg %p86
        $region18: #{tpu_custom_call.1} parent=11 // pred_check_branch
          %216 = sbr.rel (%p214) target = $region20
        $region19: #{tpu_custom_call.1} parent=11 // pred_region
          _
        $region20: #{tpu_custom_call.1} parent=11 // pred_fallthru
          _
        // Predicated region
        $region21: #{tpu_custom_call.1} parent=11 // pred_check
          %p217 = pneg %p107
        $region22: #{tpu_custom_call.1} parent=11 // pred_check_branch
          %219 = sbr.rel (%p217) target = $region24
        $region23: #{tpu_custom_call.1} parent=11 // pred_region
          _
        $region24: #{tpu_custom_call.1} parent=11 // pred_fallthru
          _
        // Predicated region
        $region25: #{tpu_custom_call.1} parent=11 // pred_check
          %p220 = pneg %p128
        $region26: #{tpu_custom_call.1} parent=11 // pred_check_branch
          %222 = sbr.rel (%p220) target = $region28
        $region27: #{tpu_custom_call.1} parent=11 // pred_region
          _
        $region28: #{tpu_custom_call.1} parent=11 // pred_fallthru
          _
        // Predicated region
        $region29: #{tpu_custom_call.1} parent=11 // pred_check
          %p223 = pneg %p149
        $region30: #{tpu_custom_call.1} parent=11 // pred_check_branch
          %225 = sbr.rel (%p223) target = $region32
        $region31: #{tpu_custom_call.1} parent=11 // pred_region
          %s227 = ssub.s32 16384, 16384
          %228 = vsyncadd [#allocation4], %s227
          %s229 = sshll.u32 [#allocation3], 4
          %s230 = int_to_ptr.vmem [resolvable:$true] %s229
          %235 = dma.hbm_to_vmem [thread:$0]  %s5, 16384, %s230, [#allocation4], 256, 256, 16
        $region32: #{tpu_custom_call.1} parent=11 // pred_fallthru
          _
        // Predicated region
        $region33: #{tpu_custom_call.1} parent=11 // pred_check
          %p236 = pneg %p170
        $region34: #{tpu_custom_call.1} parent=11 // pred_check_branch
          %238 = sbr.rel (%p236) target = $region36
        $region35: #{tpu_custom_call.1} parent=11 // pred_region
          _
        $region36: #{tpu_custom_call.1} parent=11 // pred_fallthru
          _
      $region12: #{tpu_custom_call.1} parent=5 // pred_fallthru
        _
      %p239 = scmp.lt.s32.totalorder %s18, 2
      // Predicated region
      $region37: #{tpu_custom_call.1} parent=5 // pred_check
        %p240 = pneg %p239
      $region38: #{tpu_custom_call.1} parent=5 // pred_check_branch
        %242 = sbr.rel (%p240) target = $region40
      $region39: #{tpu_custom_call.1} parent=5 // pred_region
        // Predicated region
        $region41: #{tpu_custom_call.1} parent=39 // pred_check
          %p243 = pneg %p38
        $region42: #{tpu_custom_call.1} parent=39 // pred_check_branch
          %245 = sbr.rel (%p243) target = $region44
        $region43: #{tpu_custom_call.1} parent=39 // pred_region
          %p246 = scmp.lt.s32.totalorder %s18, 1
          %s247 = scalar_select %p246, %s18, 1
          %s248 = smul.addr %s247, 8
          %s249 = smul.addr %s248, 8
          %s250 = scalar_lea.vmem %s0, %s249
        $region44: #{tpu_custom_call.1} parent=39 // pred_fallthru
          _
      $region40: #{tpu_custom_call.1} parent=5 // pred_fallthru
        _
      %p251 = scmp.le.s32.totalorder 1, %s18
      %p252 = scmp.lt.s32.totalorder %s18, 3
      %p253 = pnand %p251, %p252
      %p254 = pneg %p253
      // Predicated region
      $region45: #{tpu_custom_call.1} parent=5 // pred_check
        _
      $region46: #{tpu_custom_call.1} parent=5 // pred_check_branch
        %256 = sbr.rel (%p253) target = $region48
      $region47: #{tpu_custom_call.1} parent=5 // pred_region
        %s257 = ssub.s32 %s18, 1
        // Predicated region
        $region49: #{tpu_custom_call.1} parent=47 // pred_check
          %p258 = pneg %p149
        $region50: #{tpu_custom_call.1} parent=47 // pred_check_branch
          %260 = sbr.rel (%p258) target = $region52
        $region51: #{tpu_custom_call.1} parent=47 // pred_region
          %261 = dma.done [#allocation4], 16384
        $region52: #{tpu_custom_call.1} parent=47 // pred_fallthru
          _
        %p262 = scmp.lt.s32.totalorder %s23, 1
        %s263 = scalar_select %p262, %s23, 1
        %s264 = smul.addr %s263, 8
        %s265 = smul.addr %s264, 8
        %s266 = scalar_lea.vmem %s0, %s265
        %p267 = pneg %p44
        %p268 = pneg %p41
        %p269 = pneg %p65
        %p270 = pneg %p62
        %p271 = pneg %p86
        %p272 = pneg %p83
        %p273 = pneg %p107
        %p274 = pneg %p104
        %p275 = pneg %p128
        %p276 = pneg %p125
        %p277 = pneg %p149
        %p278 = pneg %p146
        %p279 = pneg %p170
        %p280 = pneg %p167
        %p281 = pneg %p196
        %p282 = pneg %p193
        %s283 = sand.u32 %s183, 1
        %s284 = scalar_lea.sflag [#allocation5], %s283
        %s285 = sand.u32 %s183, 1
        %s286 = smul.addr %s285, 64
        %s287 = scalar_lea.vmem [#allocation6], %s286
        %p288 = scmp.lt.s32.totalorder %s23, 1
        %s289 = scalar_select %p288, %s23, 1
        %s290 = smul.addr %s289, 8
        %s291 = smul.addr %s290, 8
        %s292 = scalar_lea.vmem %s0, %s291
        %v293 = vld [vmem:[%s292] sm:$0xff]
        %v294 = vld [vmem:[%s292 + $0x8] sm:$0xff]
        %v295 = vld [vmem:[%s292 + $0x10] sm:$0xff]
        %v296 = vld [vmem:[%s292 + $0x18] sm:$0xff]
        %v297 = vld [vmem:[%s292 + $0x20] sm:$0xff]
        %v298 = vld [vmem:[%s292 + $0x28] sm:$0xff]
        %v299 = vld [vmem:[%s292 + $0x30] sm:$0xff]
        %v300 = vld [vmem:[%s292 + $0x38] sm:$0xff]
        %v301 = vadd.f32 %v293, %v294
        %302 = vadd.xlane.f32.xlu0 %v301
        %v303 = vpop.xlane.xlu0 %302
        %v304 = vadd.f32 %v295, %v296
        %305 = vadd.xlane.f32.xlu0 %v304
        %v306 = vpop.xlane.xlu0 %305
        %v307 = vadd.f32 %v297, %v298
        %308 = vadd.xlane.f32.xlu0 %v307
        %v309 = vpop.xlane.xlu0 %308
        %v310 = vadd.f32 %v299, %v300
        %311 = vadd.xlane.f32.xlu0 %v310
        %v312 = vpop.xlane.xlu0 %311
        %v313 = vrcp.pop 256.0
        %v314 = vmul.f32 %v303, %v313
        %v315 = vmul.f32 %v306, %v313
        %v316 = vmul.f32 %v309, %v313
        %v317 = vmul.f32 %v312, %v313
        %v318 = vmax.f32 %v293, %v294
        %319 = vmax.xlane.f32.xlu0 %v318
        %v320 = vpop.xlane.xlu0 %319
        %v321 = vmax.f32 %v295, %v296
        %322 = vmax.xlane.f32.xlu0 %v321
        %v323 = vpop.xlane.xlu0 %322
        %v324 = vmax.f32 %v297, %v298
        %325 = vmax.xlane.f32.xlu0 %v324
        %v326 = vpop.xlane.xlu0 %325
        %v327 = vmax.f32 %v299, %v300
        %328 = vmax.xlane.f32.xlu0 %v327
        %v329 = vpop.xlane.xlu0 %328
        %v334 = vlaneseq
        %v335 = vand.u32 %v334, 127
        %v336 = vlaneseq
        %v337 = vshrl.u32 %v336, 7
        %v338 = vsub.s32 %v335, %v337
        %v339 = vrot.slane %v314, %v338
        %v340 = vadd.s32 %v335, 4294967288
        %v341 = vlaneseq
        %v342 = vshrl.u32 %v341, 7
        %v343 = vsub.s32 %v340, %v342
        %v344 = vrot.slane %v315, %v343
        %vm345 = vcmask 130112
        %v346 = vsel %vm345, %v344, %v339
        %v347 = vadd.s32 %v335, 4294967280
        %v348 = vlaneseq
        %v349 = vshrl.u32 %v348, 7
        %v350 = vsub.s32 %v347, %v349
        %v351 = vrot.slane %v316, %v350
        %vm352 = vcmask 195712
        %v353 = vsel %vm352, %v351, %v346
        %v354 = vadd.s32 %v335, 4294967272
        %v355 = vlaneseq
        %v356 = vshrl.u32 %v355, 7
        %v357 = vsub.s32 %v354, %v356
        %v358 = vrot.slane %v317, %v357
        %vm359 = vcmask 261312
        %v360 = vsel %vm359, %v358, %v353
        %v366 = vlaneseq
        %v367 = vshrl.u32 %v366, 7
        %v368 = vsub.s32 %v335, %v367
        %v369 = vrot.slane %v320, %v368
        %v370 = vlaneseq
        %v371 = vshrl.u32 %v370, 7
        %v372 = vsub.s32 %v340, %v371
        %v373 = vrot.slane %v323, %v372
        %v374 = vsel %vm345, %v373, %v369
        %v375 = vlaneseq
        %v376 = vshrl.u32 %v375, 7
        %v377 = vsub.s32 %v347, %v376
        %v378 = vrot.slane %v326, %v377
        %v379 = vsel %vm352, %v378, %v374
        %v380 = vlaneseq
        %v381 = vshrl.u32 %v380, 7
        %v382 = vsub.s32 %v354, %v381
        %v383 = vrot.slane %v329, %v382
        %v384 = vsel %vm359, %v383, %v379
        %vm386 = vcmask 1040384
        %v387 = vsel %vm386, %v360, %v384
        %v388 = vld [vmem:[%s1] sm:$0xff]
        %v389 = vld [vmem:[%s1 + $0x8] sm:$0xff]
        %v390 = vld [vmem:[%s1 + $0x10] sm:$0xff]
        %v391 = vld [vmem:[%s1 + $0x18] sm:$0xff]
        %v392 = vld [vmem:[%s2] sm:$0x1]
        %v394 = vlaneseq
        %v395 = vshrl.u32 %v394, 7
        %v396 = vsub.s32 0, %v395
        %v397 = vrot.slane %v392, %v396
        %vm399 = vcmask 261120
        %v401 = vsel %vm399, %v387, 0
        %403 = vmatprep.subr.mxu0 0.0
        %404 = vmatpush1.msra.mxu0 %v388
        %405 = vmatprep.subr.mxu0 0.0
        %406 = vmatpush1.msra.mxu0 %v389
        %407 = vmatprep.subr.mxu0 0.0
        %408 = vmatpush1.msra.mxu0 %v390
        %409 = vmatprep.subr.mxu0 0.0
        %410 = vmatpush1.msra.mxu0 %v391
        %411 = vmatprep.subr.mxu0 0.0
        %412 = vmatpush1.msra.mxu0 0.0
        %413 = vmatprep.subr.mxu0 0.0
        %414 = vmatpush1.msra.mxu0 0.0
        %415 = vmatprep.subr.mxu0 0.0
        %416 = vmatpush1.msra.mxu0 0.0
        %417 = vmatprep.subr.mxu0 0.0
        %418 = vmatpush1.msra.mxu0 0.0
        %419 = vmatprep.subr.mxu0 0.0
        %420 = vmatpush1.msra.mxu0 0.0
        %421 = vmatprep.subr.mxu0 0.0
        %422 = vmatpush1.msra.mxu0 0.0
        %423 = vmatprep.subr.mxu0 0.0
        %424 = vmatpush1.msra.mxu0 0.0
        %425 = vmatprep.subr.mxu0 0.0
        %426 = vmatpush1.msra.mxu0 0.0
        %427 = vmatprep.subr.mxu0 0.0
        %428 = vmatpush1.msra.mxu0 0.0
        %429 = vmatprep.subr.mxu0 0.0
        %430 = vmatpush1.msra.mxu0 0.0
        %431 = vmatprep.subr.mxu0 0.0
        %432 = vmatpush1.msra.mxu0 0.0
        %433 = vmatprep.subr.mxu0 0.0
        %434 = vmatpush1.msra.mxu0 0.0
        %435 = vmatprep.subr.mxu0 0.0
        %436 = vmatpush1.msra.mxu0 0.0
        %437 = vmatprep.subr.mxu0 0.0
        %438 = vmatpush1.msra.mxu0 0.0
        %439 = vmatprep.subr.mxu0 0.0
        %440 = vmatpush1.msra.mxu0 0.0
        %441 = vmatprep.subr.mxu0 0.0
        %442 = vmatpush1.msra.mxu0 0.0
        %443 = vmatprep.subr.mxu0 0.0
        %444 = vmatpush1.msra.mxu0 0.0
        %445 = vmatprep.subr.mxu0 0.0
        %446 = vmatpush1.msra.mxu0 0.0
        %447 = vmatprep.subr.mxu0 0.0
        %448 = vmatpush1.msra.mxu0 0.0
        %449 = vmatprep.subr.mxu0 0.0
        %450 = vmatpush1.msra.mxu0 0.0
        %451 = vmatprep.subr.mxu0 0.0
        %452 = vmatpush1.msra.mxu0 0.0
        %453 = vmatprep.subr.mxu0 0.0
        %454 = vmatpush1.msra.mxu0 0.0
        %455 = vmatprep.subr.mxu0 0.0
        %456 = vmatpush1.msra.mxu0 0.0
        %457 = vmatprep.subr.mxu0 0.0
        %458 = vmatpush1.msra.mxu0 0.0
        %459 = vmatprep.subr.mxu0 0.0
        %460 = vmatpush1.msra.mxu0 0.0
        %461 = vmatprep.subr.mxu0 0.0
        %462 = vmatpush1.msra.mxu0 0.0
        %463 = vmatprep.subr.mxu0 0.0
        %464 = vmatpush1.msra.mxu0 0.0
        %465 = vmatprep.subr.mxu0 0.0
        %466 = vmatpush1.msra.mxu0 0.0
        %467 = vmatprep.mubr.f32.mxu0 0.0
        %468 = vmatmul.mubr.f32.gmra.mrb[0].mxu0 %v401
        %v469 = vpop.f32.mrb[0].mxu0
        %v470 = vadd.f32 %v397, %v469
        %v471 = vpop.f32.mrb[0].mxu0
        %472 = vdwg.mxu0
        %v473 = vmax.f32 %v470, 0.0
        %v474 = vld [vmem:[%s3] sm:$0xff]
        %v475 = vld [vmem:[%s3 + $0x8] sm:$0xff]
        %v476 = vld [vmem:[%s3 + $0x10] sm:$0xff]
        %v477 = vld [vmem:[%s3 + $0x18] sm:$0xff]
        %v478 = vld [vmem:[%s3 + $0x20] sm:$0xff]
        %v479 = vld [vmem:[%s3 + $0x28] sm:$0xff]
        %v480 = vld [vmem:[%s3 + $0x30] sm:$0xff]
        %v481 = vld [vmem:[%s3 + $0x38] sm:$0xff]
        %v482 = vld [vmem:[%s3 + $0x40] sm:$0xff]
        %v483 = vld [vmem:[%s3 + $0x48] sm:$0xff]
        %v484 = vld [vmem:[%s3 + $0x50] sm:$0xff]
        %v485 = vld [vmem:[%s3 + $0x58] sm:$0xff]
        %v486 = vld [vmem:[%s3 + $0x60] sm:$0xff]
        %v487 = vld [vmem:[%s3 + $0x68] sm:$0xff]
        %v488 = vld [vmem:[%s3 + $0x70] sm:$0xff]
        %v489 = vld [vmem:[%s3 + $0x78] sm:$0xff]
        %v490 = vld [vmem:[%s4] sm:$0x1]
        %v492 = vlaneseq
        %v493 = vshrl.u32 %v492, 7
        %v494 = vsub.s32 0, %v493
        %v495 = vrot.slane %v490, %v494
        %497 = vmatprep.subr.mxu0 0.0
        %498 = vmatpush1.msra.mxu0 %v474
        %499 = vmatprep.subr.mxu0 0.0
        %500 = vmatpush1.msra.mxu0 %v475
        %501 = vmatprep.subr.mxu0 0.0
        %502 = vmatpush1.msra.mxu0 %v476
        %503 = vmatprep.subr.mxu0 0.0
        %504 = vmatpush1.msra.mxu0 %v477
        %505 = vmatprep.subr.mxu0 0.0
        %506 = vmatpush1.msra.mxu0 %v478
        %507 = vmatprep.subr.mxu0 0.0
        %508 = vmatpush1.msra.mxu0 %v479
        %509 = vmatprep.subr.mxu0 0.0
        %510 = vmatpush1.msra.mxu0 %v480
        %511 = vmatprep.subr.mxu0 0.0
        %512 = vmatpush1.msra.mxu0 %v481
        %513 = vmatprep.subr.mxu0 0.0
        %514 = vmatpush1.msra.mxu0 %v482
        %515 = vmatprep.subr.mxu0 0.0
        %516 = vmatpush1.msra.mxu0 %v483
        %517 = vmatprep.subr.mxu0 0.0
        %518 = vmatpush1.msra.mxu0 %v484
        %519 = vmatprep.subr.mxu0 0.0
        %520 = vmatpush1.msra.mxu0 %v485
        %521 = vmatprep.subr.mxu0 0.0
        %522 = vmatpush1.msra.mxu0 %v486
        %523 = vmatprep.subr.mxu0 0.0
        %524 = vmatpush1.msra.mxu0 %v487
        %525 = vmatprep.subr.mxu0 0.0
        %526 = vmatpush1.msra.mxu0 %v488
        %527 = vmatprep.subr.mxu0 0.0
        %528 = vmatpush1.msra.mxu0 %v489
        %529 = vmatprep.subr.mxu0 0.0
        %530 = vmatpush1.msra.mxu0 0.0
        %531 = vmatprep.subr.mxu0 0.0
        %532 = vmatpush1.msra.mxu0 0.0
        %533 = vmatprep.subr.mxu0 0.0
        %534 = vmatpush1.msra.mxu0 0.0
        %535 = vmatprep.subr.mxu0 0.0
        %536 = vmatpush1.msra.mxu0 0.0
        %537 = vmatprep.subr.mxu0 0.0
        %538 = vmatpush1.msra.mxu0 0.0
        %539 = vmatprep.subr.mxu0 0.0
        %540 = vmatpush1.msra.mxu0 0.0
        %541 = vmatprep.subr.mxu0 0.0
        %542 = vmatpush1.msra.mxu0 0.0
        %543 = vmatprep.subr.mxu0 0.0
        %544 = vmatpush1.msra.mxu0 0.0
        %545 = vmatprep.subr.mxu0 0.0
        %546 = vmatpush1.msra.mxu0 0.0
        %547 = vmatprep.subr.mxu0 0.0
        %548 = vmatpush1.msra.mxu0 0.0
        %549 = vmatprep.subr.mxu0 0.0
        %550 = vmatpush1.msra.mxu0 0.0
        %551 = vmatprep.subr.mxu0 0.0
        %552 = vmatpush1.msra.mxu0 0.0
        %553 = vmatprep.subr.mxu0 0.0
        %554 = vmatpush1.msra.mxu0 0.0
        %555 = vmatprep.subr.mxu0 0.0
        %556 = vmatpush1.msra.mxu0 0.0
        %557 = vmatprep.subr.mxu0 0.0
        %558 = vmatpush1.msra.mxu0 0.0
        %559 = vmatprep.subr.mxu0 0.0
        %560 = vmatpush1.msra.mxu0 0.0
        %561 = vmatprep.mubr.f32.mxu0 0.0
        %562 = vmatmul.mubr.f32.gmra.mrb[0].mxu0 %v473
        %v563 = vpop.f32.mrb[0].mxu0
        %v564 = vadd.f32 %v495, %v563
        %v565 = vpop.f32.mrb[0].mxu0
        %566 = vdwg.mxu0
        %v568 = vrot.slane %v564, 1
        %v570 = vadd.f32 %v564, %v568
        %v571 = vxor.u32 %v570, 2147483648
        %v572 = vmul.f32 %v571, 1.442695
        %v573 = vpow.pop %v572
        %v574 = vadd.f32 %v573, 1.0
        %v575 = vrcp.pop %v574
        %v576 = vmul.f32 1.0, %v575
        %v577 = vlaneseq
        %v578 = vshrl.u32 %v577, 7
        %v579 = vsub.s32 0, %v578
        %v580 = vrot.slane %v576, %v579
        %582 = vbcast.lane.b32.xlu0 %v580, 256
        %v583 = vpop.permute.xlu0 %582
        %s585 = sor.u32 256, 8
        %586 = vbcast.lane.b32.xlu0 %v580, %s585
        %v587 = vpop.permute.xlu0 %586
        %s589 = sor.u32 256, 16
        %590 = vbcast.lane.b32.xlu0 %v580, %s589
        %v591 = vpop.permute.xlu0 %590
        %s593 = sor.u32 256, 24
        %594 = vbcast.lane.b32.xlu0 %v580, %s593
        %v595 = vpop.permute.xlu0 %594
        %v596 = vmul.f32 %v293, %v583
        %v597 = vmul.f32 %v294, %v583
        %v598 = vmul.f32 %v295, %v587
        %v599 = vmul.f32 %v296, %v587
        %v600 = vmul.f32 %v297, %v591
        %v601 = vmul.f32 %v298, %v591
        %v602 = vmul.f32 %v299, %v595
        %v603 = vmul.f32 %v300, %v595
        %v604 = vadd.f32 %v596, %v598
        %v605 = vadd.f32 %v604, %v600
        %v606 = vadd.f32 %v605, %v602
        %v607 = vrot.slane %v606, 4
        %v608 = vadd.f32 %v606, %v607
        %v609 = vrot.slane %v608, 2
        %v610 = vadd.f32 %v608, %v609
        %v611 = vrot.slane %v610, 1
        %v612 = vadd.f32 %v610, %v611
        %v613 = vadd.f32 %v597, %v599
        %v614 = vadd.f32 %v613, %v601
        %v615 = vadd.f32 %v614, %v603
        %v616 = vrot.slane %v615, 4
        %v617 = vadd.f32 %v615, %v616
        %v618 = vrot.slane %v617, 2
        %v619 = vadd.f32 %v617, %v618
        %v620 = vrot.slane %v619, 1
        %v621 = vadd.f32 %v619, %v620
        %v622 = vrcp.pop 32.0
        %v623 = vmul.f32 %v612, %v622
        %v624 = vmul.f32 %v621, %v622
        %v625 = vmax.f32 %v596, %v600
        %v626 = vmax.f32 %v598, %v602
        %v627 = vmax.f32 %v625, %v626
        %v628 = vrot.slane %v627, 4
        %v629 = vmax.f32 %v627, %v628
        %v630 = vrot.slane %v629, 2
        %v631 = vmax.f32 %v629, %v630
        %v632 = vrot.slane %v631, 1
        %v633 = vmax.f32 %v631, %v632
        %v634 = vmax.f32 %v597, %v601
        %v635 = vmax.f32 %v599, %v603
        %v636 = vmax.f32 %v634, %v635
        %v637 = vrot.slane %v636, 4
        %v638 = vmax.f32 %v636, %v637
        %v639 = vrot.slane %v638, 2
        %v640 = vmax.f32 %v638, %v639
        %v641 = vrot.slane %v640, 1
        %v642 = vmax.f32 %v640, %v641
        %v643 = vld [vmem:[#allocation3] sm:$0xff]
        %v644 = vld [vmem:[#allocation3 + $0x8] sm:$0xff]
        %v645 = vld [vmem:[#allocation3 + $0x10] sm:$0xff]
        %v646 = vld [vmem:[#allocation3 + $0x18] sm:$0xff]
        %v647 = vld [vmem:[#allocation3 + $0x20] sm:$0xff]
        %v648 = vld [vmem:[#allocation3 + $0x28] sm:$0xff]
        %v649 = vld [vmem:[#allocation3 + $0x30] sm:$0xff]
        %v650 = vld [vmem:[#allocation3 + $0x38] sm:$0xff]
        %v651 = vld [vmem:[#allocation3 + $0x40] sm:$0xff]
        %v652 = vld [vmem:[#allocation3 + $0x48] sm:$0xff]
        %v653 = vld [vmem:[#allocation3 + $0x50] sm:$0xff]
        %v654 = vld [vmem:[#allocation3 + $0x58] sm:$0xff]
        %v655 = vld [vmem:[#allocation3 + $0x60] sm:$0xff]
        %v656 = vld [vmem:[#allocation3 + $0x68] sm:$0xff]
        %v657 = vld [vmem:[#allocation3 + $0x70] sm:$0xff]
        %v658 = vld [vmem:[#allocation3 + $0x78] sm:$0xff]
        %v659 = vld [vmem:[#allocation3 + $0x80] sm:$0xff]
        %v660 = vld [vmem:[#allocation3 + $0x88] sm:$0xff]
        %v661 = vld [vmem:[#allocation3 + $0x90] sm:$0xff]
        %v662 = vld [vmem:[#allocation3 + $0x98] sm:$0xff]
        %v663 = vld [vmem:[#allocation3 + $0xa0] sm:$0xff]
        %v664 = vld [vmem:[#allocation3 + $0xa8] sm:$0xff]
        %v665 = vld [vmem:[#allocation3 + $0xb0] sm:$0xff]
        %v666 = vld [vmem:[#allocation3 + $0xb8] sm:$0xff]
        %v667 = vld [vmem:[#allocation3 + $0xc0] sm:$0xff]
        %v668 = vld [vmem:[#allocation3 + $0xc8] sm:$0xff]
        %v669 = vld [vmem:[#allocation3 + $0xd0] sm:$0xff]
        %v670 = vld [vmem:[#allocation3 + $0xd8] sm:$0xff]
        %v671 = vld [vmem:[#allocation3 + $0xe0] sm:$0xff]
        %v672 = vld [vmem:[#allocation3 + $0xe8] sm:$0xff]
        %v673 = vld [vmem:[#allocation3 + $0xf0] sm:$0xff]
        %v674 = vld [vmem:[#allocation3 + $0xf8] sm:$0xff]
        %v675 = vld [vmem:[#allocation3 + $0x100] sm:$0xff]
        %v676 = vld [vmem:[#allocation3 + $0x108] sm:$0xff]
        %v677 = vld [vmem:[#allocation3 + $0x110] sm:$0xff]
        %v678 = vld [vmem:[#allocation3 + $0x118] sm:$0xff]
        %v679 = vld [vmem:[#allocation3 + $0x120] sm:$0xff]
        %v680 = vld [vmem:[#allocation3 + $0x128] sm:$0xff]
        %v681 = vld [vmem:[#allocation3 + $0x130] sm:$0xff]
        %v682 = vld [vmem:[#allocation3 + $0x138] sm:$0xff]
        %v683 = vld [vmem:[#allocation3 + $0x140] sm:$0xff]
        %v684 = vld [vmem:[#allocation3 + $0x148] sm:$0xff]
        %v685 = vld [vmem:[#allocation3 + $0x150] sm:$0xff]
        %v686 = vld [vmem:[#allocation3 + $0x158] sm:$0xff]
        %v687 = vld [vmem:[#allocation3 + $0x160] sm:$0xff]
        %v688 = vld [vmem:[#allocation3 + $0x168] sm:$0xff]
        %v689 = vld [vmem:[#allocation3 + $0x170] sm:$0xff]
        %v690 = vld [vmem:[#allocation3 + $0x178] sm:$0xff]
        %v691 = vld [vmem:[#allocation3 + $0x180] sm:$0xff]
        %v692 = vld [vmem:[#allocation3 + $0x188] sm:$0xff]
        %v693 = vld [vmem:[#allocation3 + $0x190] sm:$0xff]
        %v694 = vld [vmem:[#allocation3 + $0x198] sm:$0xff]
        %v695 = vld [vmem:[#allocation3 + $0x1a0] sm:$0xff]
        %v696 = vld [vmem:[#allocation3 + $0x1a8] sm:$0xff]
        %v697 = vld [vmem:[#allocation3 + $0x1b0] sm:$0xff]
        %v698 = vld [vmem:[#allocation3 + $0x1b8] sm:$0xff]
        %v699 = vld [vmem:[#allocation3 + $0x1c0] sm:$0xff]
        %v700 = vld [vmem:[#allocation3 + $0x1c8] sm:$0xff]
        %v701 = vld [vmem:[#allocation3 + $0x1d0] sm:$0xff]
        %v702 = vld [vmem:[#allocation3 + $0x1d8] sm:$0xff]
        %v703 = vld [vmem:[#allocation3 + $0x1e0] sm:$0xff]
        %v704 = vld [vmem:[#allocation3 + $0x1e8] sm:$0xff]
        %v705 = vld [vmem:[#allocation3 + $0x1f0] sm:$0xff]
        %v706 = vld [vmem:[#allocation3 + $0x1f8] sm:$0xff]
        %v707 = vld [vmem:[#allocation3 + $0x200] sm:$0xff]
        %v708 = vld [vmem:[#allocation3 + $0x208] sm:$0xff]
        %v709 = vld [vmem:[#allocation3 + $0x210] sm:$0xff]
        %v710 = vld [vmem:[#allocation3 + $0x218] sm:$0xff]
        %v711 = vld [vmem:[#allocation3 + $0x220] sm:$0xff]
        %v712 = vld [vmem:[#allocation3 + $0x228] sm:$0xff]
        %v713 = vld [vmem:[#allocation3 + $0x230] sm:$0xff]
        %v714 = vld [vmem:[#allocation3 + $0x238] sm:$0xff]
        %v715 = vld [vmem:[#allocation3 + $0x240] sm:$0xff]
        %v716 = vld [vmem:[#allocation3 + $0x248] sm:$0xff]
        %v717 = vld [vmem:[#allocation3 + $0x250] sm:$0xff]
        %v718 = vld [vmem:[#allocation3 + $0x258] sm:$0xff]
        %v719 = vld [vmem:[#allocation3 + $0x260] sm:$0xff]
        %v720 = vld [vmem:[#allocation3 + $0x268] sm:$0xff]
        %v721 = vld [vmem:[#allocation3 + $0x270] sm:$0xff]
        %v722 = vld [vmem:[#allocation3 + $0x278] sm:$0xff]
        %v723 = vld [vmem:[#allocation3 + $0x280] sm:$0xff]
        %v724 = vld [vmem:[#allocation3 + $0x288] sm:$0xff]
        %v725 = vld [vmem:[#allocation3 + $0x290] sm:$0xff]
        %v726 = vld [vmem:[#allocation3 + $0x298] sm:$0xff]
        %v727 = vld [vmem:[#allocation3 + $0x2a0] sm:$0xff]
        %v728 = vld [vmem:[#allocation3 + $0x2a8] sm:$0xff]
        %v729 = vld [vmem:[#allocation3 + $0x2b0] sm:$0xff]
        %v730 = vld [vmem:[#allocation3 + $0x2b8] sm:$0xff]
        %v731 = vld [vmem:[#allocation3 + $0x2c0] sm:$0xff]
        %v732 = vld [vmem:[#allocation3 + $0x2c8] sm:$0xff]
        %v733 = vld [vmem:[#allocation3 + $0x2d0] sm:$0xff]
        %v734 = vld [vmem:[#allocation3 + $0x2d8] sm:$0xff]
        %v735 = vld [vmem:[#allocation3 + $0x2e0] sm:$0xff]
        %v736 = vld [vmem:[#allocation3 + $0x2e8] sm:$0xff]
        %v737 = vld [vmem:[#allocation3 + $0x2f0] sm:$0xff]
        %v738 = vld [vmem:[#allocation3 + $0x2f8] sm:$0xff]
        %v739 = vld [vmem:[#allocation3 + $0x300] sm:$0xff]
        %v740 = vld [vmem:[#allocation3 + $0x308] sm:$0xff]
        %v741 = vld [vmem:[#allocation3 + $0x310] sm:$0xff]
        %v742 = vld [vmem:[#allocation3 + $0x318] sm:$0xff]
        %v743 = vld [vmem:[#allocation3 + $0x320] sm:$0xff]
        %v744 = vld [vmem:[#allocation3 + $0x328] sm:$0xff]
        %v745 = vld [vmem:[#allocation3 + $0x330] sm:$0xff]
        %v746 = vld [vmem:[#allocation3 + $0x338] sm:$0xff]
        %v747 = vld [vmem:[#allocation3 + $0x340] sm:$0xff]
        %v748 = vld [vmem:[#allocation3 + $0x348] sm:$0xff]
        %v749 = vld [vmem:[#allocation3 + $0x350] sm:$0xff]
        %v750 = vld [vmem:[#allocation3 + $0x358] sm:$0xff]
        %v751 = vld [vmem:[#allocation3 + $0x360] sm:$0xff]
        %v752 = vld [vmem:[#allocation3 + $0x368] sm:$0xff]
        %v753 = vld [vmem:[#allocation3 + $0x370] sm:$0xff]
        %v754 = vld [vmem:[#allocation3 + $0x378] sm:$0xff]
        %v755 = vld [vmem:[#allocation3 + $0x380] sm:$0xff]
        %v756 = vld [vmem:[#allocation3 + $0x388] sm:$0xff]
        %v757 = vld [vmem:[#allocation3 + $0x390] sm:$0xff]
        %v758 = vld [vmem:[#allocation3 + $0x398] sm:$0xff]
        %v759 = vld [vmem:[#allocation3 + $0x3a0] sm:$0xff]
        %v760 = vld [vmem:[#allocation3 + $0x3a8] sm:$0xff]
        %v761 = vld [vmem:[#allocation3 + $0x3b0] sm:$0xff]
        %v762 = vld [vmem:[#allocation3 + $0x3b8] sm:$0xff]
        %v763 = vld [vmem:[#allocation3 + $0x3c0] sm:$0xff]
        %v764 = vld [vmem:[#allocation3 + $0x3c8] sm:$0xff]
        %v765 = vld [vmem:[#allocation3 + $0x3d0] sm:$0xff]
        %v766 = vld [vmem:[#allocation3 + $0x3d8] sm:$0xff]
        %v767 = vld [vmem:[#allocation3 + $0x3e0] sm:$0xff]
        %v768 = vld [vmem:[#allocation3 + $0x3e8] sm:$0xff]
        %v769 = vld [vmem:[#allocation3 + $0x3f0] sm:$0xff]
        %v770 = vld [vmem:[#allocation3 + $0x3f8] sm:$0xff]
        %s771 = sld [smem:[#allocation2]]
        %v772 = vstv %s771
        %773 = vmatprep.subr.mxu0 %v644
        %774 = vmatpush1.msra.mxu0 %v643
        %775 = vmatprep.subr.mxu0 %v646
        %776 = vmatpush1.msra.mxu0 %v645
        %777 = vmatprep.subr.mxu0 %v648
        %778 = vmatpush1.msra.mxu0 %v647
        %779 = vmatprep.subr.mxu0 %v650
        %780 = vmatpush1.msra.mxu0 %v649
        %781 = vmatprep.subr.mxu0 %v652
        %782 = vmatpush1.msra.mxu0 %v651
        %783 = vmatprep.subr.mxu0 %v654
        %784 = vmatpush1.msra.mxu0 %v653
        %785 = vmatprep.subr.mxu0 %v656
        %786 = vmatpush1.msra.mxu0 %v655
        %787 = vmatprep.subr.mxu0 %v658
        %788 = vmatpush1.msra.mxu0 %v657
        %789 = vmatprep.subr.mxu0 %v660
        %790 = vmatpush1.msra.mxu0 %v659
        %791 = vmatprep.subr.mxu0 %v662
        %792 = vmatpush1.msra.mxu0 %v661
        %793 = vmatprep.subr.mxu0 %v664
        %794 = vmatpush1.msra.mxu0 %v663
        %795 = vmatprep.subr.mxu0 %v666
        %796 = vmatpush1.msra.mxu0 %v665
        %797 = vmatprep.subr.mxu0 %v668
        %798 = vmatpush1.msra.mxu0 %v667
        %799 = vmatprep.subr.mxu0 %v670
        %800 = vmatpush1.msra.mxu0 %v669
        %801 = vmatprep.subr.mxu0 %v672
        %802 = vmatpush1.msra.mxu0 %v671
        %803 = vmatprep.subr.mxu0 %v674
        %804 = vmatpush1.msra.mxu0 %v673
        %805 = vmatprep.subr.mxu0 %v676
        %806 = vmatpush1.msra.mxu0 %v675
        %807 = vmatprep.subr.mxu0 %v678
        %808 = vmatpush1.msra.mxu0 %v677
        %809 = vmatprep.subr.mxu0 %v680
        %810 = vmatpush1.msra.mxu0 %v679
        %811 = vmatprep.subr.mxu0 %v682
        %812 = vmatpush1.msra.mxu0 %v681
        %813 = vmatprep.subr.mxu0 %v684
        %814 = vmatpush1.msra.mxu0 %v683
        %815 = vmatprep.subr.mxu0 %v686
        %816 = vmatpush1.msra.mxu0 %v685
        %817 = vmatprep.subr.mxu0 %v688
        %818 = vmatpush1.msra.mxu0 %v687
        %819 = vmatprep.subr.mxu0 %v690
        %820 = vmatpush1.msra.mxu0 %v689
        %821 = vmatprep.subr.mxu0 %v692
        %822 = vmatpush1.msra.mxu0 %v691
        %823 = vmatprep.subr.mxu0 %v694
        %824 = vmatpush1.msra.mxu0 %v693
        %825 = vmatprep.subr.mxu0 %v696
        %826 = vmatpush1.msra.mxu0 %v695
        %827 = vmatprep.subr.mxu0 %v698
        %828 = vmatpush1.msra.mxu0 %v697
        %829 = vmatprep.subr.mxu0 %v700
        %830 = vmatpush1.msra.mxu0 %v699
        %831 = vmatprep.subr.mxu0 %v702
        %832 = vmatpush1.msra.mxu0 %v701
        %833 = vmatprep.subr.mxu0 %v704
        %834 = vmatpush1.msra.mxu0 %v703
        %835 = vmatprep.subr.mxu0 %v706
        %836 = vmatpush1.msra.mxu0 %v705
        %837 = vmatprep.mubr.f32.mxu0 %v624
        %838 = vmatmul.mubr.f32.gmra.mrb[0].mxu0 %v623
        %v839 = vpop.f32.mrb[0].mxu0
        %v840 = vadd.f32 %v772, %v839
        %v841 = vpop.f32.mrb[0].mxu0
        %v842 = vadd.f32 %v772, %v841
        %843 = vdwg.mxu0
        %844 = vmatprep.subr.mxu0 %v708
        %845 = vmatpush1.msra.mxu0 %v707
        %846 = vmatprep.subr.mxu0 %v710
        %847 = vmatpush1.msra.mxu0 %v709
        %848 = vmatprep.subr.mxu0 %v712
        %849 = vmatpush1.msra.mxu0 %v711
        %850 = vmatprep.subr.mxu0 %v714
        %851 = vmatpush1.msra.mxu0 %v713
        %852 = vmatprep.subr.mxu0 %v716
        %853 = vmatpush1.msra.mxu0 %v715
        %854 = vmatprep.subr.mxu0 %v718
        %855 = vmatpush1.msra.mxu0 %v717
        %856 = vmatprep.subr.mxu0 %v720
        %857 = vmatpush1.msra.mxu0 %v719
        %858 = vmatprep.subr.mxu0 %v722
        %859 = vmatpush1.msra.mxu0 %v721
        %860 = vmatprep.subr.mxu0 %v724
        %861 = vmatpush1.msra.mxu0 %v723
        %862 = vmatprep.subr.mxu0 %v726
        %863 = vmatpush1.msra.mxu0 %v725
        %864 = vmatprep.subr.mxu0 %v728
        %865 = vmatpush1.msra.mxu0 %v727
        %866 = vmatprep.subr.mxu0 %v730
        %867 = vmatpush1.msra.mxu0 %v729
        %868 = vmatprep.subr.mxu0 %v732
        %869 = vmatpush1.msra.mxu0 %v731
        %870 = vmatprep.subr.mxu0 %v734
        %871 = vmatpush1.msra.mxu0 %v733
        %872 = vmatprep.subr.mxu0 %v736
        %873 = vmatpush1.msra.mxu0 %v735
        %874 = vmatprep.subr.mxu0 %v738
        %875 = vmatpush1.msra.mxu0 %v737
        %876 = vmatprep.subr.mxu0 %v740
        %877 = vmatpush1.msra.mxu0 %v739
        %878 = vmatprep.subr.mxu0 %v742
        %879 = vmatpush1.msra.mxu0 %v741
        %880 = vmatprep.subr.mxu0 %v744
        %881 = vmatpush1.msra.mxu0 %v743
        %882 = vmatprep.subr.mxu0 %v746
        %883 = vmatpush1.msra.mxu0 %v745
        %884 = vmatprep.subr.mxu0 %v748
        %885 = vmatpush1.msra.mxu0 %v747
        %886 = vmatprep.subr.mxu0 %v750
        %887 = vmatpush1.msra.mxu0 %v749
        %888 = vmatprep.subr.mxu0 %v752
        %889 = vmatpush1.msra.mxu0 %v751
        %890 = vmatprep.subr.mxu0 %v754
        %891 = vmatpush1.msra.mxu0 %v753
        %892 = vmatprep.subr.mxu0 %v756
        %893 = vmatpush1.msra.mxu0 %v755
        %894 = vmatprep.subr.mxu0 %v758
        %895 = vmatpush1.msra.mxu0 %v757
        %896 = vmatprep.subr.mxu0 %v760
        %897 = vmatpush1.msra.mxu0 %v759
        %898 = vmatprep.subr.mxu0 %v762
        %899 = vmatpush1.msra.mxu0 %v761
        %900 = vmatprep.subr.mxu0 %v764
        %901 = vmatpush1.msra.mxu0 %v763
        %902 = vmatprep.subr.mxu0 %v766
        %903 = vmatpush1.msra.mxu0 %v765
        %904 = vmatprep.subr.mxu0 %v768
        %905 = vmatpush1.msra.mxu0 %v767
        %906 = vmatprep.subr.mxu0 %v770
        %907 = vmatpush1.msra.mxu0 %v769
        %908 = vmatprep.mubr.f32.mxu0 %v642
        %909 = vmatmul.mubr.f32.gmra.mrb[0].mxu0 %v633
        %v910 = vpop.f32.mrb[0].mxu0
        %v911 = vadd.f32 %v840, %v910
        %v912 = vpop.f32.mrb[0].mxu0
        %v913 = vadd.f32 %v842, %v912
        %914 = vdwg.mxu0
        %v915 = vxor.u32 %v911, 2147483648
        %v916 = vxor.u32 %v913, 2147483648
        %v917 = vmul.f32 %v915, 1.442695
        %v918 = vpow.pop %v917
        %v919 = vmul.f32 %v916, 1.442695
        %v920 = vpow.pop %v919
        %v921 = vadd.f32 %v918, 1.0
        %v922 = vadd.f32 %v920, 1.0
        %v923 = vrcp.pop %v921
        %v924 = vmul.f32 1.0, %v923
        %v925 = vrcp.pop %v922
        %v926 = vmul.f32 1.0, %v925
        %v927 = vlaneseq
        %v928 = vshrl.u32 %v927, 7
        %v929 = vsub.s32 0, %v928
        %v930 = vrot.slane %v924, %v929
        %v931 = vlaneseq
        %v932 = vshrl.u32 %v931, 7
        %v933 = vsub.s32 0, %v932
        %v934 = vrot.slane %v926, %v933
        %v935 = vmul.f32 %v596, %v930
        %v936 = vmul.f32 %v597, %v934
        %v937 = vmul.f32 %v598, %v930
        %v938 = vmul.f32 %v599, %v934
        %v939 = vmul.f32 %v600, %v930
        %v940 = vmul.f32 %v601, %v934
        %v941 = vmul.f32 %v602, %v930
        %v942 = vmul.f32 %v603, %v934
        %943 = vst [vmem:[%s287] sm:$0xff] %v935
        %944 = vst [vmem:[%s287 + $0x8] sm:$0xff] %v936
        %945 = vst [vmem:[%s287 + $0x10] sm:$0xff] %v937
        %946 = vst [vmem:[%s287 + $0x18] sm:$0xff] %v938
        %947 = vst [vmem:[%s287 + $0x20] sm:$0xff] %v939
        %948 = vst [vmem:[%s287 + $0x28] sm:$0xff] %v940
        %949 = vst [vmem:[%s287 + $0x30] sm:$0xff] %v941
        %950 = vst [vmem:[%s287 + $0x38] sm:$0xff] %v942
        %s951 = sand.u32 %s183, 1
        %s952 = scalar_lea.sflag [#allocation5], %s951
        %s953 = sand.u32 %s183, 1
        %s954 = smul.addr %s953, 64
        %s955 = scalar_lea.vmem [#allocation6], %s954
        // Predicated region
        $region53: #{tpu_custom_call.1} parent=47 // pred_check
          %p956 = pneg %p193
        $region54: #{tpu_custom_call.1} parent=47 // pred_check_branch
          %958 = sbr.rel (%p956) target = $region56
        $region55: #{tpu_custom_call.1} parent=47 // pred_region
          %s960 = ssub.s32 1024, 1024
          %961 = vsyncadd %s952, %s960
          %s962 = smul.addr %s23, 8
          %s963 = smul.addr %s962, 128
          %s964 = scalar_lea.hbm %s7, %s963
          %s965 = sshll.u32 %s955, 4
          %s966 = int_to_ptr.vmem [resolvable:$true] %s965
          %971 = dma.vmem_to_hbm [thread:$0]  %s966, 1024, %s964, %s952, 256, 256, 16
        $region56: #{tpu_custom_call.1} parent=47 // pred_fallthru
          _
      $region48: #{tpu_custom_call.1} parent=5 // pred_fallthru
        _
      %p972 = scmp.le.s32.totalorder 2, %s18
      // Predicated region
      $region57: #{tpu_custom_call.1} parent=5 // pred_check
        %p973 = pneg %p972
      $region58: #{tpu_custom_call.1} parent=5 // pred_check_branch
        %975 = sbr.rel (%p973) target = $region60
      $region59: #{tpu_custom_call.1} parent=5 // pred_region
        %s976 = ssub.s32 %s18, 2
        // Predicated region
        $region61: #{tpu_custom_call.1} parent=59 // pred_check
          %p977 = pneg %p199
        $region62: #{tpu_custom_call.1} parent=59 // pred_check_branch
          %979 = sbr.rel (%p977) target = $region64
        $region63: #{tpu_custom_call.1} parent=59 // pred_region
          %s980 = sand.u32 %s184, 1
          %s981 = scalar_lea.sflag [#allocation5], %s980
          %s982 = sand.u32 %s184, 1
          %s983 = smul.addr %s982, 64
          %s984 = scalar_lea.vmem [#allocation6], %s983
          %985 = dma.done %s981, 1024
        $region64: #{tpu_custom_call.1} parent=59 // pred_fallthru
          _
      $region60: #{tpu_custom_call.1} parent=5 // pred_fallthru
        _
    $region6: #{tpu_custom_call.1} parent=1 // loop_footer
      %s22 = sadd.s32 1, %s18
    $region7: #{tpu_custom_call.1} parent=1 // loop_footer_branch
      %17 = sbr.rel target = $region3
    $region8: #{tpu_custom_call.1} parent=1 // loop_exit
      _
    %986 = vsyncpa [#allocation4], 1
    %s987 = scalar_lea.sflag [#allocation4], 1
    %988 = vsyncpa %s987, 1
    %989 = vsyncpa [#allocation5], 1
    %s990 = scalar_lea.sflag [#allocation5], 1
    %991 = vsyncpa %s990, 1

</llo_original>
